<compile_context>
chip_gen: v5e
topology: v5e:2x2
jax: 0.10.0
libtpu: 0.0.40
codegen_flags: <defaults>
</compile_context>

<pallas_src>
import jax
import jax.numpy as jnp
import numpy as np
from jax.experimental import pallas as pl
from jax.experimental.pallas import tpu as pltpu

ATT_SLOPE = 0.2    # GATConv negative_slope (attention logits)
OUT_SLOPE = 0.01   # F.leaky_relu default slope (output activation)
NEG_BIG = -1e30    # score assigned to masked (non-edge) entries


def _leaky_relu(x, slope):
    return jnp.where(x >= 0, x, slope * x)


# ---------------------------------------------------------------------------
# Pass 1: projection  h = x @ W^T  and per-node attention logits a_src / a_dst.
# ---------------------------------------------------------------------------
def projection_kernel(x_ref, wT_ref, att_src_ref, att_dst_ref,
                      h_ref, a_src_ref, a_dst_ref):
    # (tm, C_in) @ (C_in, C_out) on the MXU, f32 accumulate.
    h = jnp.dot(x_ref[...], wT_ref[...], preferred_element_type=jnp.float32)
    # Logits from the *unrounded* f32 h (keeps the softmax accurate even when h is
    # stored in bf16 for the aggregation matmul).
    a_dst_ref[...] = jnp.sum(h * att_dst_ref[...], axis=-1, keepdims=True)      # (tm, 1)
    a_src_ref[...] = jax.lax.dot_general(                                       # (1, tm)
        att_src_ref[...], h,
        dimension_numbers=(((1,), (1,)), ((), ())),
        preferred_element_type=jnp.float32)
    h_ref[...] = h.astype(h_ref.dtype)


# ---------------------------------------------------------------------------
# Pass 2: per destination-row tile — masked softmax + MXU aggregation + epilogue.
# ---------------------------------------------------------------------------
def attention_kernel(a_dst_ref, a_src_ref, adj_ref, h_ref, bias_ref, out_ref):
    adj = adj_ref[...].astype(jnp.float32)                   # (tm, N) edge multiplicities
    # s[i, j] = leaky_relu(a_dst[i] + a_src[j], 0.2)
    s = _leaky_relu(a_dst_ref[...] + a_src_ref[...], ATT_SLOPE)
    s = jnp.where(adj > 0.0, s, NEG_BIG)
    m = jnp.max(s, axis=-1, keepdims=True)       # finite: every row has a self-loop
    p = jnp.exp(s - m) * adj                     # duplicate edges weighted by count
    denom = jnp.sum(p, axis=-1, keepdims=True)   # >= 1
    agg = jnp.dot(p.astype(h_ref.dtype), h_ref[...],
                  preferred_element_type=jnp.float32)
    out = agg * pl.reciprocal(denom, approx=False) + bias_ref[...]
    out_ref[...] = _leaky_relu(out, OUT_SLOPE).astype(out_ref.dtype)


# ---------------------------------------------------------------------------
# Host-side helpers / wrapper
# ---------------------------------------------------------------------------
def _vmem_limit(block_bytes, extra_bytes=0):
    """Scoped-VMEM limit: double-buffered pipelined blocks + live intermediates +
    headroom, capped at 64 MiB so the same value is legal on v7x (64 MiB physical)."""
    est = 2 * int(sum(block_bytes)) + int(extra_bytes) + (4 << 20)
    return int(min(max(est, 32 << 20), 64 << 20))


def build_dense_adj(edge_index, padded_nodes):
    """edge_index (2, E) int32 -> (padded_nodes, padded_nodes) int8 multiplicity matrix.
    adj[i, j] = #edges j -> i, diagonal forced to exactly 1
    (== GATConv's remove_self_loops() + add_self_loops()).
    Build ONCE per static graph and reuse across forward calls."""
    src, dst = edge_index[0], edge_index[1]
    counts = jnp.zeros((padded_nodes, padded_nodes), jnp.int32).at[dst, src].add(1)
    idx = jnp.arange(padded_nodes)
    counts = counts.at[idx, idx].set(1)
    # TODO(synk): duplicate-edge multiplicities are clipped at 127 to fit int8.
    return jnp.clip(counts, 0, 127).astype(jnp.int8)


def encoder_layer_forward(x, edge_index, edge_weight, wT, att_src, att_dst, bias,
                          *, adj=None, row_tile=128, mxu_bf16=True):
    """x: (N, C_in) f32; edge_index: (2, E) int32; wT: (C_in, C_out) f32 (pre-transposed);
    att_src/att_dst/bias: (C_out,) f32; adj: optional pre-built int8 adjacency
    (build_dense_adj).  Returns (N, C_out) f32."""
    del edge_weight  # TODO(synk): unused — GATConv(edge_dim=None) has no lin_edge.
    N, C_in = x.shape
    C_out = wT.shape[1]
    tm = row_tile
    n_pad = pl.cdiv(N, tm) * tm
    n_tiles = n_pad // tm

    if adj is None:
        # TODO(synk): rebuilding the O(N^2) scatter every call dominates for large N;
        # callers with static graphs should pass a cached adj.
        adj = build_dense_adj(edge_index, n_pad)

    if n_pad != N:
        x = jnp.pad(x, ((0, n_pad - N), (0, 0)))   # padded rows are zeros, sliced off below

    att_src2 = att_src.reshape(1, C_out).astype(jnp.float32)
    att_dst2 = att_dst.reshape(1, C_out).astype(jnp.float32)
    bias2 = bias.reshape(1, C_out).astype(jnp.float32)

    h_dtype = jnp.bfloat16 if mxu_bf16 else jnp.float32
    h_bytes = jnp.dtype(h_dtype).itemsize

    # ---- pass 1: projection + per-node attention logits ----------------------------
    p1_blocks = (tm * C_in * 4, C_in * C_out * 4, 2 * C_out * 4,
                 tm * C_out * h_bytes, tm * 4, tm * 4)
    h, a_src, a_dst = pl.pallas_call(
        projection_kernel,
        out_shape=(jax.ShapeDtypeStruct((n_pad, C_out), h_dtype),
                   jax.ShapeDtypeStruct((1, n_pad), jnp.float32),
                   jax.ShapeDtypeStruct((n_pad, 1), jnp.float32)),
        grid=(n_tiles,),
        in_specs=[
            pl.BlockSpec((tm, C_in), lambda i: (i, 0)),
            pl.BlockSpec((C_in, C_out), lambda i: (0, 0)),
            pl.BlockSpec((1, C_out), lambda i: (0, 0)),
            pl.BlockSpec((1, C_out), lambda i: (0, 0)),
        ],
        out_specs=(
            pl.BlockSpec((tm, C_out), lambda i: (i, 0)),
            pl.BlockSpec((1, tm), lambda i: (0, i)),     # a_src lane-dense, written once
            pl.BlockSpec((tm, 1), lambda i: (i, 0)),
        ),
        compiler_params=pltpu.CompilerParams(
            dimension_semantics=("parallel",),
            vmem_limit_bytes=_vmem_limit(p1_blocks, tm * C_out * 4)),
    )(x, wT, att_src2, att_dst2)

    # ---- pass 2: destination-row-tiled masked softmax + aggregation ----------------
    p2_blocks = (tm * 4, n_pad * 4, tm * n_pad * 1,
                 n_pad * C_out * h_bytes, C_out * 4, tm * C_out * 4)
    p2_scratch = 2 * tm * n_pad * 4                      # s and p f32 intermediates
    out = pl.pallas_call(
        attention_kernel,
        out_shape=jax.ShapeDtypeStruct((n_pad, C_out), jnp.float32),
        grid=(n_tiles,),
        in_specs=[
            pl.BlockSpec((tm, 1), lambda i: (i, 0)),         # a_dst row-tile
            pl.BlockSpec((1, n_pad), lambda i: (0, 0)),      # a_src (resident, lane-dense)
            pl.BlockSpec((tm, n_pad), lambda i: (i, 0)),     # adj int8 stream
            pl.BlockSpec((n_pad, C_out), lambda i: (0, 0)),  # h (resident)
            pl.BlockSpec((1, C_out), lambda i: (0, 0)),      # bias
        ],
        out_specs=pl.BlockSpec((tm, C_out), lambda i: (i, 0)),
        compiler_params=pltpu.CompilerParams(
            dimension_semantics=("parallel",),
            vmem_limit_bytes=_vmem_limit(p2_blocks, p2_scratch)),
    )(a_dst, a_src, adj, h, bias2)

    return out[:N]


# ---------------------------------------------------------------------------
# Reference + demo
# ---------------------------------------------------------------------------
def glorot_uniform(key, shape, fan_in, fan_out):
    bound = float(np.sqrt(6.0 / (fan_in + fan_out)))
    return jax.random.uniform(key, shape, jnp.float32, minval=-bound, maxval=bound)


def reference_forward(x, edge_index, wT, att_src, att_dst, bias,
                      att_slope=ATT_SLOPE, out_slope=OUT_SLOPE):
    """Edge-list (per-edge softmax) NumPy reference, faithful to torch_geometric GATConv."""
    x = np.asarray(x, np.float64)
    wT = np.asarray(wT, np.float64)
    att_src = np.asarray(att_src, np.float64)
    att_dst = np.asarray(att_dst, np.float64)
    bias = np.asarray(bias, np.float64)
    src = np.asarray(edge_index[0])
    dst = np.asarray(edge_index[1])

    N = x.shape[0]
    h = x @ wT
    a_src = h @ att_src
    a_dst = h @ att_dst

    keep = src != dst                                   # remove_self_loops
    src = np.concatenate([src[keep], np.arange(N)])     # add_self_loops
    dst = np.concatenate([dst[keep], np.arange(N)])

    out = np.zeros((N, h.shape[1]), np.float64)
    for i in range(N):
        nbrs = src[dst == i]                            # incoming edges (with duplicates)
        e = a_src[nbrs] + a_dst[i]
        e = np.where(e >= 0, e, att_slope * e)
        p = np.exp(e - e.max())
        alpha = p / p.sum()
        out[i] = alpha @ h[nbrs]
    out = out + bias
    return np.where(out >= 0, out, out_slope * out).astype(np.float32)


if __name__ == "__main__":
    key = jax.random.PRNGKey(0)
    k_x, k_w, k_as, k_ad, k_b, k_e1, k_e2 = jax.random.split(key, 7)

    # Small demo: 200 nodes (exercises padding to the 128-row tile and a 2-step grid),
    # 64 input features, 128 lane-dense output features, 600 directed edges.
    N, C_in, C_out, E = 200, 64, 128, 600

    x = jax.random.normal(k_x, (N, C_in), dtype=jnp.float32)

    # GATConv parameters (PyTorch layouts); weight transposed ONCE at setup.
    w = glorot_uniform(k_w, (C_out, C_in), C_in, C_out)    # nn.Linear weight (C_out, C_in)
    wT = jnp.asarray(w.T)                                  # one-time transpose
    att_src = glorot_uniform(k_as, (C_out,), C_out, 1)
    att_dst = glorot_uniform(k_ad, (C_out,), C_out, 1)
    bias = 0.1 * jax.random.normal(k_b, (C_out,), dtype=jnp.float32)

    # Random directed graph (duplicates / self-loops allowed; handled exactly like PyG).
    src = jax.random.randint(k_e1, (E,), 0, N, dtype=jnp.int32)
    dst = jax.random.randint(k_e2, (E,), 0, N, dtype=jnp.int32)
    edge_index = jnp.stack([src, dst])
    edge_weight = jnp.ones((E,), jnp.float32)              # unused (edge_dim=None)

    # Dense int8 adjacency built ONCE for the static graph, reused per forward call.
    tm = 128
    n_pad = pl.cdiv(N, tm) * tm
    adj = build_dense_adj(edge_index, n_pad)
    jax.block_until_ready(adj)

    y_ref = reference_forward(x, edge_index, wT, att_src, att_dst, bias)

    # Exact f32 MXU path (strict check against the float64 edge-list reference).
    y_f32 = encoder_layer_forward(x, edge_index, edge_weight, wT, att_src, att_dst,
                                  bias, adj=adj, row_tile=tm, mxu_bf16=False)
    jax.block_until_ready(y_f32)
    np.testing.assert_allclose(np.asarray(y_f32), y_ref, rtol=1e-4, atol=1e-5)

    # bf16 aggregation path (h stored bf16, p @ h on the bf16-native MXU of v6e/v7x).
    y_bf16 = encoder_layer_forward(x, edge_index, edge_weight, wT, att_src, att_dst,
                                   bias, adj=adj, row_tile=tm, mxu_bf16=True)
    jax.block_until_ready(y_bf16)
    np.testing.assert_allclose(np.asarray(y_bf16), y_ref, rtol=2e-2, atol=2e-2)

    print("KERNEL_OK")
</pallas_src>

<mosaic_0001>
module attributes {stable_mosaic.version = 11 : i64} {
  func.func @projection_kernel(%arg0: i32, %arg1: memref<128x64xf32, #tpu.memory_space<vmem>>, %arg2: memref<64x128xf32, #tpu.memory_space<vmem>>, %arg3: memref<1x128xf32, #tpu.memory_space<vmem>>, %arg4: memref<1x128xf32, #tpu.memory_space<vmem>>, %arg5: memref<128x128xf32, #tpu.memory_space<vmem>>, %arg6: memref<1x128xf32, #tpu.memory_space<vmem>>, %arg7: memref<128x1xf32, #tpu.memory_space<vmem>>) attributes {dimension_semantics = [#tpu.dimension_semantics<parallel>], iteration_bounds = array<i64: 2>, scalar_prefetch = 0 : i64, scratch_operands = 0 : i64, tpu.core_type = #tpu.core_type<tc>, window_params = [{transform_indices = @transform_0, window_bounds = array<i64: 128, 64>}, {pipeline_mode = #tpu.pipeline_mode<synchronous>, transform_indices = @transform_1, window_bounds = array<i64: 64, 128>}, {pipeline_mode = #tpu.pipeline_mode<synchronous>, transform_indices = @transform_2, window_bounds = array<i64: 1, 128>}, {pipeline_mode = #tpu.pipeline_mode<synchronous>, transform_indices = @transform_3, window_bounds = array<i64: 1, 128>}, {transform_indices = @transform_4, window_bounds = array<i64: 128, 128>}, {transform_indices = @transform_5, window_bounds = array<i64: 1, 128>}, {transform_indices = @transform_6, window_bounds = array<i64: 128, 1>}]} {
    %c0 = arith.constant 0 : index
    %c0_0 = arith.constant 0 : index
    %0 = vector.load %arg1[%c0, %c0_0] : memref<128x64xf32, #tpu.memory_space<vmem>>, vector<128x64xf32>
    %c0_1 = arith.constant 0 : index
    %c0_2 = arith.constant 0 : index
    %1 = vector.load %arg2[%c0_1, %c0_2] : memref<64x128xf32, #tpu.memory_space<vmem>>, vector<64x128xf32>
    %cst = arith.constant dense<0.000000e+00> : vector<128x128xf32>
    %2 = tpu.matmul %0, %1, %cst {dimension_numbers = #tpu.dot_dimension_numbers<[1], [0], [0], [1], [0, 0, 1, 1], [], []>} : vector<128x64xf32>, vector<64x128xf32>, vector<128x128xf32> -> vector<128x128xf32>
    %c0_3 = arith.constant 0 : index
    %c0_4 = arith.constant 0 : index
    %3 = vector.load %arg4[%c0_3, %c0_4] : memref<1x128xf32, #tpu.memory_space<vmem>>, vector<1x128xf32>
    %4 = vector.broadcast %3 : vector<1x128xf32> to vector<128x128xf32>
    %5 = arith.mulf %2, %4 : vector<128x128xf32>
    %cst_5 = arith.constant dense<0.000000e+00> : vector<128xf32>
    %6 = vector.multi_reduction <add>, %5, %cst_5 [1] : vector<128x128xf32> to vector<128xf32>
    %7 = vector.shape_cast %6 : vector<128xf32> to vector<128x1xf32>
    %c0_6 = arith.constant 0 : index
    %c0_7 = arith.constant 0 : index
    %8 = vector.load %arg7[%c0_6, %c0_7] : memref<128x1xf32, #tpu.memory_space<vmem>>, vector<128x1xf32>
    tpu.vector_store %arg7[%c0_6, %c0_7], %7 {strides = array<i32>} : memref<128x1xf32, #tpu.memory_space<vmem>>, vector<128x1xf32>,
    %c0_8 = arith.constant 0 : index
    %c0_9 = arith.constant 0 : index
    %9 = vector.load %arg3[%c0_8, %c0_9] : memref<1x128xf32, #tpu.memory_space<vmem>>, vector<1x128xf32>
    %cst_10 = arith.constant dense<0.000000e+00> : vector<1x128xf32>
    %10 = tpu.matmul %9, %2, %cst_10 {dimension_numbers = #tpu.dot_dimension_numbers<[1], [1], [0], [0], [0, 0, 1, 0], [], []>} : vector<1x128xf32>, vector<128x128xf32>, vector<1x128xf32> -> vector<1x128xf32>
    %c0_11 = arith.constant 0 : index
    %c0_12 = arith.constant 0 : index
    %11 = vector.load %arg6[%c0_11, %c0_12] : memref<1x128xf32, #tpu.memory_space<vmem>>, vector<1x128xf32>
    tpu.vector_store %arg6[%c0_11, %c0_12], %10 {strides = array<i32>} : memref<1x128xf32, #tpu.memory_space<vmem>>, vector<1x128xf32>,
    %c0_13 = arith.constant 0 : index
    %c0_14 = arith.constant 0 : index
    %12 = vector.load %arg5[%c0_13, %c0_14] : memref<128x128xf32, #tpu.memory_space<vmem>>, vector<128x128xf32>
    tpu.vector_store %arg5[%c0_13, %c0_14], %2 {strides = array<i32>} : memref<128x128xf32, #tpu.memory_space<vmem>>, vector<128x128xf32>,
    return
  }
  func.func @transform_0(%arg0: i32) -> (i32, i32) {
    %c0_i32 = arith.constant 0 : i32
    %c0_i32_0 = arith.constant 0 : i32
    return %arg0, %c0_i32 : i32, i32
  }
  func.func @transform_1(%arg0: i32) -> (i32, i32) {
    %c0_i32 = arith.constant 0 : i32
    %c0_i32_0 = arith.constant 0 : i32
    %c0_i32_1 = arith.constant 0 : i32
    return %c0_i32, %c0_i32_0 : i32, i32
  }
  func.func @transform_2(%arg0: i32) -> (i32, i32) {
    %c0_i32 = arith.constant 0 : i32
    %c0_i32_0 = arith.constant 0 : i32
    %c0_i32_1 = arith.constant 0 : i32
    return %c0_i32, %c0_i32_0 : i32, i32
  }
  func.func @transform_3(%arg0: i32) -> (i32, i32) {
    %c0_i32 = arith.constant 0 : i32
    %c0_i32_0 = arith.constant 0 : i32
    %c0_i32_1 = arith.constant 0 : i32
    return %c0_i32, %c0_i32_0 : i32, i32
  }
  func.func @transform_4(%arg0: i32) -> (i32, i32) {
    %c0_i32 = arith.constant 0 : i32
    %c0_i32_0 = arith.constant 0 : i32
    return %arg0, %c0_i32 : i32, i32
  }
  func.func @transform_5(%arg0: i32) -> (i32, i32) {
    %c0_i32 = arith.constant 0 : i32
    %c0_i32_0 = arith.constant 0 : i32
    return %c0_i32, %arg0 : i32, i32
  }
  func.func @transform_6(%arg0: i32) -> (i32, i32) {
    %c0_i32 = arith.constant 0 : i32
    %c0_i32_0 = arith.constant 0 : i32
    return %arg0, %c0_i32 : i32, i32
  }
}

</mosaic_0001>

<llo_original>
// kernel: tpu_custom_call.1
$region0: #{tpu_custom_call.1}
  #allocation0 [shape = 'u32[]', space=smem, size = 0x4, offset = 0x4, fixed_abs, tag = 'smem constant byte address 0x4 - core index']
  #allocation1 [shape = 'u32[72,128]{1,0:T(1,128)}', space=vmem, size = 0x9000, scoped, tag = 'internal scratch']
  %s0 = inlined_call_operand.vmem [shape: f32[256,64], index: 0, kind: input, shape index: {}]
  %s1 = inlined_call_operand.vmem [shape: f32[64,128], index: 1, kind: input, shape index: {}]
  %s2 = inlined_call_operand.vmem [shape: f32[1,128], index: 2, kind: input, shape index: {}]
  %s3 = inlined_call_operand.vmem [shape: f32[1,128], index: 3, kind: input, shape index: {}]
  %s4 = inlined_call_operand.hbm [shape: f32[256,128], index: 4, kind: output, shape index: {0}]
  %s5 = inlined_call_operand.hbm [shape: f32[1,256], index: 5, kind: output, shape index: {1}]
  %s6 = inlined_call_operand.vmem [shape: f32[256,1], index: 6, kind: output, shape index: {2}]
  %7 = xla_tuple %s4, %s5, %s6
  %s8 = sld [smem:[#allocation0]]
  $region65: #{tpu_custom_call.1} parent=0
    _
  %s10 = ssub.s32 1, %s8
  %s11 = scalar_select 0, %s10, %s8
  $region1: #{tpu_custom_call.1} parent=0
    #allocation2 [shape = 'u8[131072]{0}', space=vmem, size = 0x20000, scoped, tag = 'output window, operand 0']
    #allocation3 [shape = 's32[2]{0}', space=sflag, size = 0x8, scoped, tag = 'scoped memory for tpu_custom_call.1']
    #allocation4 [shape = 'u8[1024]{0}', space=vmem, size = 0x400, scoped, tag = 'output window, operand 1']
    #allocation5 [shape = 's32[2]{0}', space=sflag, size = 0x8, scoped, tag = 'scoped memory for tpu_custom_call.1']
    %12 = vsyncpa [#allocation3], 0
    %s13 = scalar_lea.sflag [#allocation3], 1
    %14 = vsyncpa %s13, 0
    %15 = vsyncpa [#allocation5], 0
    %s16 = scalar_lea.sflag [#allocation5], 1
    %17 = vsyncpa %s16, 0
    loop: start=0, step=1, limit=4
    $region2: #{tpu_custom_call.1} parent=1 // loop_pre_header
      _
    $region3: #{tpu_custom_call.1} parent=1 // loop_header
      %s19 = sphi 0, %s23
      %p20 = scmp.ge.s32.totalorder %s19, 4
      %s29 = sphi 0, %s31
      %s32 = sphi 0, %s29
      %s33 = sphi 0, %s32
      %s49 = sphi 0, %s33
      %s53 = sphi 0, %s53
      %s55 = sphi 0, %s53
      %s56 = sphi 0, %s55
      %s70 = sphi 0, %s56
      %s74 = sphi 0, %s74
      %s76 = sphi 0, %s74
      %s77 = sphi 0, %s76
      %s91 = sphi 0, %s77
      %s95 = sphi 0, %s95
      %s97 = sphi 0, %s95
      %s98 = sphi 0, %s97
      %s112 = sphi 0, %s98
      %s118 = sphi 0, %s120
      %s121 = sphi 0, %s118
      %s122 = sphi 0, %s121
      %s138 = sphi 0, %s122
      %s144 = sphi 0, %s146
      %s147 = sphi 0, %s144
      %s148 = sphi 0, %s147
      %s164 = sphi 0, %s148
      %s170 = sphi 0, %s172
      %s173 = sphi 0, %s170
      %s174 = sphi 0, %s173
      %s190 = sphi 0, %s174
    $region4: #{tpu_custom_call.1} parent=1 // loop_header_branch
      %22 = sbr.rel (%p20) target = $region8
    $region5: #{tpu_custom_call.1} parent=1 // loop_body
      %s24 = ssub.s32 %s19, 1
      %s25 = ssub.s32 %s19, 2
      %s26 = sadd.s32 %s19, 1
      %s27 = ssub.s32 %s19, %s26
      %p28 = scmp.eq.s32.totalorder %s27, 0
      %s30 = sadd.s32 %s29, 1
      %s31 = scalar_select %p28, %s29, %s30
      %p34 = pneg %p28
      %p35 = scmp.eq.s32.totalorder %s19, 1
      %p36 = por %p34, %p35
      %p37 = scmp.ne.s32.totalorder %s29, %s32
      %p38 = scmp.eq.s32.totalorder %s19, 0
      %p39 = por %p37, %p38
      %p40 = scmp.ne.s32.totalorder %s29, %s32
      %p41 = scmp.eq.s32.totalorder %s24, 1
      %p42 = por %p40, %p41
      %p43 = scmp.ne.s32.totalorder %s32, %s33
      %p44 = scmp.eq.s32.totalorder %s24, 0
      %p45 = por %p43, %p44
      %p46 = scmp.ne.s32.totalorder %s32, %s33
      %p47 = scmp.eq.s32.totalorder %s25, 1
      %p48 = por %p46, %p47
      %p50 = scmp.ne.s32.totalorder %s33, %s49
      %p51 = scmp.eq.s32.totalorder %s25, 0
      %p52 = por %p50, %p51
      %s54 = sadd.s32 %s53, 1
      %p57 = scmp.eq.s32.totalorder %s19, 1
      %p58 = scmp.ne.s32.totalorder %s53, %s55
      %p59 = scmp.eq.s32.totalorder %s19, 0
      %p60 = por %p58, %p59
      %p61 = scmp.ne.s32.totalorder %s53, %s55
      %p62 = scmp.eq.s32.totalorder %s24, 1
      %p63 = por %p61, %p62
      %p64 = scmp.ne.s32.totalorder %s55, %s56
      %p65 = scmp.eq.s32.totalorder %s24, 0
      %p66 = por %p64, %p65
      %p67 = scmp.ne.s32.totalorder %s55, %s56
      %p68 = scmp.eq.s32.totalorder %s25, 1
      %p69 = por %p67, %p68
      %p71 = scmp.ne.s32.totalorder %s56, %s70
      %p72 = scmp.eq.s32.totalorder %s25, 0
      %p73 = por %p71, %p72
      %s75 = sadd.s32 %s74, 1
      %p78 = scmp.eq.s32.totalorder %s19, 1
      %p79 = scmp.ne.s32.totalorder %s74, %s76
      %p80 = scmp.eq.s32.totalorder %s19, 0
      %p81 = por %p79, %p80
      %p82 = scmp.ne.s32.totalorder %s74, %s76
      %p83 = scmp.eq.s32.totalorder %s24, 1
      %p84 = por %p82, %p83
      %p85 = scmp.ne.s32.totalorder %s76, %s77
      %p86 = scmp.eq.s32.totalorder %s24, 0
      %p87 = por %p85, %p86
      %p88 = scmp.ne.s32.totalorder %s76, %s77
      %p89 = scmp.eq.s32.totalorder %s25, 1
      %p90 = por %p88, %p89
      %p92 = scmp.ne.s32.totalorder %s77, %s91
      %p93 = scmp.eq.s32.totalorder %s25, 0
      %p94 = por %p92, %p93
      %s96 = sadd.s32 %s95, 1
      %p99 = scmp.eq.s32.totalorder %s19, 1
      %p100 = scmp.ne.s32.totalorder %s95, %s97
      %p101 = scmp.eq.s32.totalorder %s19, 0
      %p102 = por %p100, %p101
      %p103 = scmp.ne.s32.totalorder %s95, %s97
      %p104 = scmp.eq.s32.totalorder %s24, 1
      %p105 = por %p103, %p104
      %p106 = scmp.ne.s32.totalorder %s97, %s98
      %p107 = scmp.eq.s32.totalorder %s24, 0
      %p108 = por %p106, %p107
      %p109 = scmp.ne.s32.totalorder %s97, %s98
      %p110 = scmp.eq.s32.totalorder %s25, 1
      %p111 = por %p109, %p110
      %p113 = scmp.ne.s32.totalorder %s98, %s112
      %p114 = scmp.eq.s32.totalorder %s25, 0
      %p115 = por %p113, %p114
      %s116 = ssub.s32 %s19, %s26
      %p117 = scmp.eq.s32.totalorder %s116, 0
      %s119 = sadd.s32 %s118, 1
      %s120 = scalar_select %p117, %s118, %s119
      %p123 = pneg %p117
      %p124 = scmp.eq.s32.totalorder %s19, 1
      %p125 = por %p123, %p124
      %p126 = scmp.ne.s32.totalorder %s118, %s121
      %p127 = scmp.eq.s32.totalorder %s19, 0
      %p128 = por %p126, %p127
      %p129 = scmp.ne.s32.totalorder %s118, %s121
      %p130 = scmp.eq.s32.totalorder %s24, 1
      %p131 = por %p129, %p130
      %p132 = scmp.ne.s32.totalorder %s121, %s122
      %p133 = scmp.eq.s32.totalorder %s24, 0
      %p134 = por %p132, %p133
      %p135 = scmp.ne.s32.totalorder %s121, %s122
      %p136 = scmp.eq.s32.totalorder %s25, 1
      %p137 = por %p135, %p136
      %p139 = scmp.ne.s32.totalorder %s122, %s138
      %p140 = scmp.eq.s32.totalorder %s25, 0
      %p141 = por %p139, %p140
      %s142 = ssub.s32 %s19, %s26
      %p143 = scmp.eq.s32.totalorder %s142, 0
      %s145 = sadd.s32 %s144, 1
      %s146 = scalar_select %p143, %s144, %s145
      %p149 = pneg %p143
      %p150 = scmp.eq.s32.totalorder %s19, 1
      %p151 = por %p149, %p150
      %p152 = scmp.ne.s32.totalorder %s144, %s147
      %p153 = scmp.eq.s32.totalorder %s19, 0
      %p154 = por %p152, %p153
      %p155 = scmp.ne.s32.totalorder %s144, %s147
      %p156 = scmp.eq.s32.totalorder %s24, 1
      %p157 = por %p155, %p156
      %p158 = scmp.ne.s32.totalorder %s147, %s148
      %p159 = scmp.eq.s32.totalorder %s24, 0
      %p160 = por %p158, %p159
      %p161 = scmp.ne.s32.totalorder %s147, %s148
      %p162 = scmp.eq.s32.totalorder %s25, 1
      %p163 = por %p161, %p162
      %p165 = scmp.ne.s32.totalorder %s148, %s164
      %p166 = scmp.eq.s32.totalorder %s25, 0
      %p167 = por %p165, %p166
      %s168 = ssub.s32 %s19, %s26
      %p169 = scmp.eq.s32.totalorder %s168, 0
      %s171 = sadd.s32 %s170, 1
      %s172 = scalar_select %p169, %s170, %s171
      %p175 = pneg %p169
      %p176 = scmp.eq.s32.totalorder %s19, 1
      %p177 = por %p175, %p176
      %p178 = scmp.ne.s32.totalorder %s170, %s173
      %p179 = scmp.eq.s32.totalorder %s19, 0
      %p180 = por %p178, %p179
      %p181 = scmp.ne.s32.totalorder %s170, %s173
      %p182 = scmp.eq.s32.totalorder %s24, 1
      %p183 = por %p181, %p182
      %p184 = scmp.ne.s32.totalorder %s173, %s174
      %p185 = scmp.eq.s32.totalorder %s24, 0
      %p186 = por %p184, %p185
      %p187 = scmp.ne.s32.totalorder %s173, %s174
      %p188 = scmp.eq.s32.totalorder %s25, 1
      %p189 = por %p187, %p188
      %p191 = scmp.ne.s32.totalorder %s174, %s190
      %p192 = scmp.eq.s32.totalorder %s25, 0
      %p193 = por %p191, %p192
      %p194 = scmp.le.s32.totalorder 1, %s19
      %p195 = scmp.lt.s32.totalorder %s19, 3
      %p196 = pnand %p194, %p195
      %p197 = pneg %p196
      // Predicated region
      $region9: #{tpu_custom_call.1} parent=5 // pred_check
        _
      $region10: #{tpu_custom_call.1} parent=5 // pred_check_branch
        %199 = sbr.rel (%p196) target = $region12
      $region11: #{tpu_custom_call.1} parent=5 // pred_region
        %s200 = ssub.s32 %s19, 1
        // Predicated region
        $region13: #{tpu_custom_call.1} parent=11 // pred_check
          %p201 = pneg %p66
        $region14: #{tpu_custom_call.1} parent=11 // pred_check_branch
          %203 = sbr.rel (%p201) target = $region16
        $region15: #{tpu_custom_call.1} parent=11 // pred_region
          _
        $region16: #{tpu_custom_call.1} parent=11 // pred_fallthru
          _
        // Predicated region
        $region17: #{tpu_custom_call.1} parent=11 // pred_check
          %p204 = pneg %p87
        $region18: #{tpu_custom_call.1} parent=11 // pred_check_branch
          %206 = sbr.rel (%p204) target = $region20
        $region19: #{tpu_custom_call.1} parent=11 // pred_region
          _
        $region20: #{tpu_custom_call.1} parent=11 // pred_fallthru
          _
        // Predicated region
        $region21: #{tpu_custom_call.1} parent=11 // pred_check
          %p207 = pneg %p108
        $region22: #{tpu_custom_call.1} parent=11 // pred_check_branch
          %209 = sbr.rel (%p207) target = $region24
        $region23: #{tpu_custom_call.1} parent=11 // pred_region
          _
        $region24: #{tpu_custom_call.1} parent=11 // pred_fallthru
          _
      $region12: #{tpu_custom_call.1} parent=5 // pred_fallthru
        _
      %p210 = scmp.lt.s32.totalorder %s19, 2
      // Predicated region
      $region25: #{tpu_custom_call.1} parent=5 // pred_check
        %p211 = pneg %p210
      $region26: #{tpu_custom_call.1} parent=5 // pred_check_branch
        %213 = sbr.rel (%p211) target = $region28
      $region27: #{tpu_custom_call.1} parent=5 // pred_region
        // Predicated region
        $region29: #{tpu_custom_call.1} parent=27 // pred_check
          %p214 = pneg %p39
        $region30: #{tpu_custom_call.1} parent=27 // pred_check_branch
          %216 = sbr.rel (%p214) target = $region32
        $region31: #{tpu_custom_call.1} parent=27 // pred_region
          %s217 = smul.u32 16, %s19
          %p218 = scmp.lt.s32.totalorder %s217, 31
          %s219 = scalar_select %p218, %s217, 31
          %s220 = smul.addr %s219, 8
          %s221 = scalar_lea.vmem %s0, %s220
          %s222 = smul.u32 16, %s19
        $region32: #{tpu_custom_call.1} parent=27 // pred_fallthru
          _
      $region28: #{tpu_custom_call.1} parent=5 // pred_fallthru
        _
      %p223 = scmp.le.s32.totalorder 1, %s19
      %p224 = scmp.lt.s32.totalorder %s19, 3
      %p225 = pnand %p223, %p224
      %p226 = pneg %p225
      // Predicated region
      $region33: #{tpu_custom_call.1} parent=5 // pred_check
        _
      $region34: #{tpu_custom_call.1} parent=5 // pred_check_branch
        %228 = sbr.rel (%p225) target = $region36
      $region35: #{tpu_custom_call.1} parent=5 // pred_region
        %s229 = ssub.s32 %s19, 1
        %s230 = smul.u32 16, %s24
        %p231 = scmp.lt.s32.totalorder %s230, 31
        %s232 = scalar_select %p231, %s230, 31
        %s233 = smul.addr %s232, 8
        %s234 = scalar_lea.vmem %s0, %s233
        %p235 = pneg %p45
        %p236 = pneg %p42
        %p237 = pneg %p66
        %p238 = pneg %p63
        %p239 = pneg %p87
        %p240 = pneg %p84
        %p241 = pneg %p108
        %p242 = pneg %p105
        %p243 = pneg %p134
        %p244 = pneg %p131
        %s245 = sand.u32 %s121, 1
        %s246 = scalar_lea.sflag [#allocation3], %s245
        %s247 = sand.u32 %s121, 1
        %s248 = smul.addr %s247, 128
        %s249 = scalar_lea.vmem [#allocation2], %s248
        %p250 = pneg %p160
        %p251 = pneg %p157
        %s252 = sand.u32 %s147, 1
        %s253 = scalar_lea.sflag [#allocation5], %s252
        %s254 = sand.u32 %s147, 1
        %s255 = scalar_lea.vmem [#allocation4], %s254
        %p256 = pneg %p186
        %p257 = pneg %p183
        %s258 = smul.u32 16, %s24
        %p259 = scmp.lt.s32.totalorder %s258, 31
        %s260 = scalar_select %p259, %s258, 31
        %s261 = smul.addr %s260, 8
        %s262 = scalar_lea.vmem %s6, %s261
        %s263 = smul.u32 16, %s24
        %p264 = scmp.lt.s32.totalorder %s263, 31
        %s265 = scalar_select %p264, %s263, 31
        %s266 = smul.addr %s265, 8
        %s267 = scalar_lea.vmem %s0, %s266
        %s268 = smul.u32 16, %s24
        %s269 = smul.u32 16, %s24
        %s270 = smul.u32 16, %s24
        %p271 = scmp.lt.s32.totalorder %s270, 31
        %s272 = scalar_select %p271, %s270, 31
        %s273 = smul.addr %s272, 8
        %s274 = scalar_lea.vmem %s6, %s273
        %s275 = smul.u32 16, %s24
        %v276 = vld [vmem:[%s267] sm:$0xff]
        %v277 = vld [vmem:[%s267 + $0x8] sm:$0xff]
        %v278 = vld [vmem:[%s267 + $0x10] sm:$0xff]
        %v279 = vld [vmem:[%s267 + $0x18] sm:$0xff]
        %v280 = vld [vmem:[%s267 + $0x20] sm:$0xff]
        %v281 = vld [vmem:[%s267 + $0x28] sm:$0xff]
        %v282 = vld [vmem:[%s267 + $0x30] sm:$0xff]
        %v283 = vld [vmem:[%s267 + $0x38] sm:$0xff]
        %v284 = vld [vmem:[%s267 + $0x40] sm:$0xff]
        %v285 = vld [vmem:[%s267 + $0x48] sm:$0xff]
        %v286 = vld [vmem:[%s267 + $0x50] sm:$0xff]
        %v287 = vld [vmem:[%s267 + $0x58] sm:$0xff]
        %v288 = vld [vmem:[%s267 + $0x60] sm:$0xff]
        %v289 = vld [vmem:[%s267 + $0x68] sm:$0xff]
        %v290 = vld [vmem:[%s267 + $0x70] sm:$0xff]
        %v291 = vld [vmem:[%s267 + $0x78] sm:$0xff]
        %v292 = vld [vmem:[%s1] sm:$0xff]
        %v293 = vld [vmem:[%s1 + $0x8] sm:$0xff]
        %v294 = vld [vmem:[%s1 + $0x10] sm:$0xff]
        %v295 = vld [vmem:[%s1 + $0x18] sm:$0xff]
        %v296 = vld [vmem:[%s1 + $0x20] sm:$0xff]
        %v297 = vld [vmem:[%s1 + $0x28] sm:$0xff]
        %v298 = vld [vmem:[%s1 + $0x30] sm:$0xff]
        %v299 = vld [vmem:[%s1 + $0x38] sm:$0xff]
        %vm300 = vcmask 523264
        %v302 = vsel %vm300, %v276, 0
        %v305 = vsel %vm300, %v277, 0
        %v308 = vsel %vm300, %v278, 0
        %v311 = vsel %vm300, %v279, 0
        %v314 = vsel %vm300, %v280, 0
        %v317 = vsel %vm300, %v281, 0
        %v320 = vsel %vm300, %v282, 0
        %v323 = vsel %vm300, %v283, 0
        %v326 = vsel %vm300, %v284, 0
        %v329 = vsel %vm300, %v285, 0
        %v332 = vsel %vm300, %v286, 0
        %v335 = vsel %vm300, %v287, 0
        %v338 = vsel %vm300, %v288, 0
        %v341 = vsel %vm300, %v289, 0
        %v344 = vsel %vm300, %v290, 0
        %v347 = vsel %vm300, %v291, 0
        %349 = vmatpush.msra.mxu0 0.0
        %350 = vmatpush.msra.mxu0 0.0
        %351 = vmatpush.msra.mxu0 0.0
        %352 = vmatpush.msra.mxu0 0.0
        %353 = vmatpush.msra.mxu0 0.0
        %354 = vmatpush.msra.mxu0 0.0
        %355 = vmatpush.msra.mxu0 0.0
        %356 = vmatpush.msra.mxu0 0.0
        %357 = vmatpush.msra.mxu0 %v299
        %358 = vmatpush.msra.mxu0 %v298
        %359 = vmatpush.msra.mxu0 %v297
        %360 = vmatpush.msra.mxu0 %v296
        %361 = vmatpush.msra.mxu0 %v295
        %362 = vmatpush.msra.mxu0 %v294
        %363 = vmatpush.msra.mxu0 %v293
        %364 = vmatpush.msra.mxu0 %v292
        %365 = vmatmul.f32.gmra.mxu0 %v302
        %v366 = vpop.f32.mrf.mxu0
        %v367 = vadd.f32 0.0, %v366
        %368 = vmatmul.f32.gmra.mxu0 %v305
        %v369 = vpop.f32.mrf.mxu0
        %v370 = vadd.f32 0.0, %v369
        %371 = vmatmul.f32.gmra.mxu0 %v308
        %v372 = vpop.f32.mrf.mxu0
        %v373 = vadd.f32 0.0, %v372
        %374 = vmatmul.f32.gmra.mxu0 %v311
        %v375 = vpop.f32.mrf.mxu0
        %v376 = vadd.f32 0.0, %v375
        %377 = vmatmul.f32.gmra.mxu0 %v314
        %v378 = vpop.f32.mrf.mxu0
        %v379 = vadd.f32 0.0, %v378
        %380 = vmatmul.f32.gmra.mxu0 %v317
        %v381 = vpop.f32.mrf.mxu0
        %v382 = vadd.f32 0.0, %v381
        %383 = vmatmul.f32.gmra.mxu0 %v320
        %v384 = vpop.f32.mrf.mxu0
        %v385 = vadd.f32 0.0, %v384
        %386 = vmatmul.f32.gmra.mxu0 %v323
        %v387 = vpop.f32.mrf.mxu0
        %v388 = vadd.f32 0.0, %v387
        %389 = vmatmul.f32.gmra.mxu0 %v326
        %v390 = vpop.f32.mrf.mxu0
        %v391 = vadd.f32 0.0, %v390
        %392 = vmatmul.f32.gmra.mxu0 %v329
        %v393 = vpop.f32.mrf.mxu0
        %v394 = vadd.f32 0.0, %v393
        %395 = vmatmul.f32.gmra.mxu0 %v332
        %v396 = vpop.f32.mrf.mxu0
        %v397 = vadd.f32 0.0, %v396
        %398 = vmatmul.f32.gmra.mxu0 %v335
        %v399 = vpop.f32.mrf.mxu0
        %v400 = vadd.f32 0.0, %v399
        %401 = vmatmul.f32.gmra.mxu0 %v338
        %v402 = vpop.f32.mrf.mxu0
        %v403 = vadd.f32 0.0, %v402
        %404 = vmatmul.f32.gmra.mxu0 %v341
        %v405 = vpop.f32.mrf.mxu0
        %v406 = vadd.f32 0.0, %v405
        %407 = vmatmul.f32.gmra.mxu0 %v344
        %v408 = vpop.f32.mrf.mxu0
        %v409 = vadd.f32 0.0, %v408
        %410 = vmatmul.f32.gmra.mxu0 %v347
        %v411 = vpop.f32.mrf.mxu0
        %v412 = vadd.f32 0.0, %v411
        %413 = vdwg.mxu0
        %v414 = vld [vmem:[%s3] sm:$0x1]
        %v416 = vperm.slane %v414, 0
        %v418 = vmul.f32 %v367, %v416
        %v419 = vmul.f32 %v370, %v416
        %v420 = vmul.f32 %v373, %v416
        %v421 = vmul.f32 %v376, %v416
        %v422 = vmul.f32 %v379, %v416
        %v423 = vmul.f32 %v382, %v416
        %v424 = vmul.f32 %v385, %v416
        %v425 = vmul.f32 %v388, %v416
        %v426 = vmul.f32 %v391, %v416
        %v427 = vmul.f32 %v394, %v416
        %v428 = vmul.f32 %v397, %v416
        %v429 = vmul.f32 %v400, %v416
        %v430 = vmul.f32 %v403, %v416
        %v431 = vmul.f32 %v406, %v416
        %v432 = vmul.f32 %v409, %v416
        %v433 = vmul.f32 %v412, %v416
        %434 = vadd.xlane.f32.xlu0 %v418
        %v435 = vpop.xlane.xlu0 %434
        %436 = vadd.xlane.f32.xlu0 %v419
        %v437 = vpop.xlane.xlu0 %436
        %438 = vadd.xlane.f32.xlu0 %v420
        %v439 = vpop.xlane.xlu0 %438
        %440 = vadd.xlane.f32.xlu0 %v421
        %v441 = vpop.xlane.xlu0 %440
        %442 = vadd.xlane.f32.xlu0 %v422
        %v443 = vpop.xlane.xlu0 %442
        %444 = vadd.xlane.f32.xlu0 %v423
        %v445 = vpop.xlane.xlu0 %444
        %446 = vadd.xlane.f32.xlu0 %v424
        %v447 = vpop.xlane.xlu0 %446
        %448 = vadd.xlane.f32.xlu0 %v425
        %v449 = vpop.xlane.xlu0 %448
        %450 = vadd.xlane.f32.xlu0 %v426
        %v451 = vpop.xlane.xlu0 %450
        %452 = vadd.xlane.f32.xlu0 %v427
        %v453 = vpop.xlane.xlu0 %452
        %454 = vadd.xlane.f32.xlu0 %v428
        %v455 = vpop.xlane.xlu0 %454
        %456 = vadd.xlane.f32.xlu0 %v429
        %v457 = vpop.xlane.xlu0 %456
        %458 = vadd.xlane.f32.xlu0 %v430
        %v459 = vpop.xlane.xlu0 %458
        %460 = vadd.xlane.f32.xlu0 %v431
        %v461 = vpop.xlane.xlu0 %460
        %462 = vadd.xlane.f32.xlu0 %v432
        %v463 = vpop.xlane.xlu0 %462
        %464 = vadd.xlane.f32.xlu0 %v433
        %v465 = vpop.xlane.xlu0 %464
        %vm466 = vcmask 7168
        %467 = vst.msk [vmem:[%s274] sm:$0xff] %vm466, %v435
        %468 = vst.msk [vmem:[%s274 + $0x8] sm:$0xff] %vm466, %v437
        %469 = vst.msk [vmem:[%s274 + $0x10] sm:$0xff] %vm466, %v439
        %470 = vst.msk [vmem:[%s274 + $0x18] sm:$0xff] %vm466, %v441
        %471 = vst.msk [vmem:[%s274 + $0x20] sm:$0xff] %vm466, %v443
        %472 = vst.msk [vmem:[%s274 + $0x28] sm:$0xff] %vm466, %v445
        %473 = vst.msk [vmem:[%s274 + $0x30] sm:$0xff] %vm466, %v447
        %474 = vst.msk [vmem:[%s274 + $0x38] sm:$0xff] %vm466, %v449
        %475 = vst.msk [vmem:[%s274 + $0x40] sm:$0xff] %vm466, %v451
        %476 = vst.msk [vmem:[%s274 + $0x48] sm:$0xff] %vm466, %v453
        %477 = vst.msk [vmem:[%s274 + $0x50] sm:$0xff] %vm466, %v455
        %478 = vst.msk [vmem:[%s274 + $0x58] sm:$0xff] %vm466, %v457
        %479 = vst.msk [vmem:[%s274 + $0x60] sm:$0xff] %vm466, %v459
        %480 = vst.msk [vmem:[%s274 + $0x68] sm:$0xff] %vm466, %v461
        %481 = vst.msk [vmem:[%s274 + $0x70] sm:$0xff] %vm466, %v463
        %482 = vst.msk [vmem:[%s274 + $0x78] sm:$0xff] %vm466, %v465
        %v483 = vld [vmem:[%s2] sm:$0x1]
        %484 = vmatpush.xpose.msra.mxu0 %v412
        %485 = vmatpush.xpose.msra.mxu0 %v409
        %486 = vmatpush.xpose.msra.mxu0 %v406
        %487 = vmatpush.xpose.msra.mxu0 %v403
        %488 = vmatpush.xpose.msra.mxu0 %v400
        %489 = vmatpush.xpose.msra.mxu0 %v397
        %490 = vmatpush.xpose.msra.mxu0 %v394
        %491 = vmatpush.xpose.msra.mxu0 %v391
        %492 = vmatpush.xpose.msra.mxu0 %v388
        %493 = vmatpush.xpose.msra.mxu0 %v385
        %494 = vmatpush.xpose.msra.mxu0 %v382
        %495 = vmatpush.xpose.msra.mxu0 %v379
        %496 = vmatpush.xpose.msra.mxu0 %v376
        %497 = vmatpush.xpose.msra.mxu0 %v373
        %498 = vmatpush.xpose.msra.mxu0 %v370
        %499 = vmatpush.xpose.msra.mxu0 %v367
        %500 = vmatmul.f32.gmra.mxu0 %v483
        %v501 = vpop.f32.mrf.mxu0
        %v502 = vadd.f32 0.0, %v501
        %503 = vdwg.mxu0
        %504 = vst [vmem:[%s255] sm:$0x1] %v502
        %505 = vst [vmem:[%s249] sm:$0xff] %v367
        %506 = vst [vmem:[%s249 + $0x8] sm:$0xff] %v370
        %507 = vst [vmem:[%s249 + $0x10] sm:$0xff] %v373
        %508 = vst [vmem:[%s249 + $0x18] sm:$0xff] %v376
        %509 = vst [vmem:[%s249 + $0x20] sm:$0xff] %v379
        %510 = vst [vmem:[%s249 + $0x28] sm:$0xff] %v382
        %511 = vst [vmem:[%s249 + $0x30] sm:$0xff] %v385
        %512 = vst [vmem:[%s249 + $0x38] sm:$0xff] %v388
        %513 = vst [vmem:[%s249 + $0x40] sm:$0xff] %v391
        %514 = vst [vmem:[%s249 + $0x48] sm:$0xff] %v394
        %515 = vst [vmem:[%s249 + $0x50] sm:$0xff] %v397
        %516 = vst [vmem:[%s249 + $0x58] sm:$0xff] %v400
        %517 = vst [vmem:[%s249 + $0x60] sm:$0xff] %v403
        %518 = vst [vmem:[%s249 + $0x68] sm:$0xff] %v406
        %519 = vst [vmem:[%s249 + $0x70] sm:$0xff] %v409
        %520 = vst [vmem:[%s249 + $0x78] sm:$0xff] %v412
        %s521 = sand.u32 %s121, 1
        %s522 = scalar_lea.sflag [#allocation3], %s521
        %s523 = sand.u32 %s121, 1
        %s524 = smul.addr %s523, 128
        %s525 = scalar_lea.vmem [#allocation2], %s524
        %s526 = sand.u32 %s147, 1
        %s527 = scalar_lea.sflag [#allocation5], %s526
        %s528 = sand.u32 %s147, 1
        %s529 = scalar_lea.vmem [#allocation4], %s528
        %s530 = smul.u32 16, %s24
        %p531 = scmp.lt.s32.totalorder %s530, 31
        %s532 = scalar_select %p531, %s530, 31
        %s533 = smul.addr %s532, 8
        %s534 = scalar_lea.vmem %s6, %s533
        // Predicated region
        $region37: #{tpu_custom_call.1} parent=35 // pred_check
          %p535 = pneg %p131
        $region38: #{tpu_custom_call.1} parent=35 // pred_check_branch
          %537 = sbr.rel (%p535) target = $region40
        $region39: #{tpu_custom_call.1} parent=35 // pred_region
          %s538 = smul.u32 16, %s24
          %540 = vsyncadd %s522, 0
          %s541 = smul.addr %s538, 8
          %s542 = scalar_lea.hbm %s4, %s541
          %s543 = sshll.u32 %s525, 4
          %s544 = int_to_ptr.vmem [resolvable:$true] %s543
          %s545 = sshll.u32 %s542, 4
          %s546 = int_to_ptr.hbm [resolvable:$true] %s545
          %551 = dma.vmem_to_hbm [thread:$0]  %s544, 2048, %s546, %s522, 128, 128, 8
        $region40: #{tpu_custom_call.1} parent=35 // pred_fallthru
          _
        // Predicated region
        $region41: #{tpu_custom_call.1} parent=35 // pred_check
          %p552 = pneg %p157
        $region42: #{tpu_custom_call.1} parent=35 // pred_check_branch
          %554 = sbr.rel (%p552) target = $region44
        $region43: #{tpu_custom_call.1} parent=35 // pred_region
          %556 = vsyncadd %s527, 0
          %s557 = scalar_lea.hbm %s5, %s24
          %s559 = sshll.u32 %s529, 4
          %s560 = int_to_ptr.vmem [resolvable:$true] %s559
          %s561 = sshll.u32 %s557, 4
          %s562 = int_to_ptr.hbm [resolvable:$true] %s561
          %564 = dma.vmem_to_hbm [thread:$0]  %s560, 16, %s562, %s527
        $region44: #{tpu_custom_call.1} parent=35 // pred_fallthru
          _
        // Predicated region
        $region45: #{tpu_custom_call.1} parent=35 // pred_check
          %p565 = pneg %p183
        $region46: #{tpu_custom_call.1} parent=35 // pred_check_branch
          %567 = sbr.rel (%p565) target = $region48
        $region47: #{tpu_custom_call.1} parent=35 // pred_region
          %s568 = smul.u32 16, %s24
        $region48: #{tpu_custom_call.1} parent=35 // pred_fallthru
          _
      $region36: #{tpu_custom_call.1} parent=5 // pred_fallthru
        _
      %p569 = scmp.le.s32.totalorder 2, %s19
      // Predicated region
      $region49: #{tpu_custom_call.1} parent=5 // pred_check
        %p570 = pneg %p569
      $region50: #{tpu_custom_call.1} parent=5 // pred_check_branch
        %572 = sbr.rel (%p570) target = $region52
      $region51: #{tpu_custom_call.1} parent=5 // pred_region
        %s573 = ssub.s32 %s19, 2
        // Predicated region
        $region53: #{tpu_custom_call.1} parent=51 // pred_check
          %p574 = pneg %p137
        $region54: #{tpu_custom_call.1} parent=51 // pred_check_branch
          %576 = sbr.rel (%p574) target = $region56
        $region55: #{tpu_custom_call.1} parent=51 // pred_region
          %s577 = sand.u32 %s122, 1
          %s578 = scalar_lea.sflag [#allocation3], %s577
          %s579 = sand.u32 %s122, 1
          %s580 = smul.addr %s579, 128
          %s581 = scalar_lea.vmem [#allocation2], %s580
          %583 = dma.done %s578, 2048
        $region56: #{tpu_custom_call.1} parent=51 // pred_fallthru
          _
        // Predicated region
        $region57: #{tpu_custom_call.1} parent=51 // pred_check
          %p584 = pneg %p163
        $region58: #{tpu_custom_call.1} parent=51 // pred_check_branch
          %586 = sbr.rel (%p584) target = $region60
        $region59: #{tpu_custom_call.1} parent=51 // pred_region
          %s587 = sand.u32 %s148, 1
          %s588 = scalar_lea.sflag [#allocation5], %s587
          %s589 = sand.u32 %s148, 1
          %s590 = scalar_lea.vmem [#allocation4], %s589
          %592 = dma.done %s588, 16
        $region60: #{tpu_custom_call.1} parent=51 // pred_fallthru
          _
        // Predicated region
        $region61: #{tpu_custom_call.1} parent=51 // pred_check
          %p593 = pneg %p189
        $region62: #{tpu_custom_call.1} parent=51 // pred_check_branch
          %595 = sbr.rel (%p593) target = $region64
        $region63: #{tpu_custom_call.1} parent=51 // pred_region
          %s596 = smul.u32 16, %s25
          %p597 = scmp.lt.s32.totalorder %s596, 31
          %s598 = scalar_select %p597, %s596, 31
          %s599 = smul.addr %s598, 8
          %s600 = scalar_lea.vmem %s6, %s599
        $region64: #{tpu_custom_call.1} parent=51 // pred_fallthru
          _
      $region52: #{tpu_custom_call.1} parent=5 // pred_fallthru
        _
    $region6: #{tpu_custom_call.1} parent=1 // loop_footer
      %s23 = sadd.s32 1, %s19
    $region7: #{tpu_custom_call.1} parent=1 // loop_footer_branch
      %18 = sbr.rel target = $region3
    $region8: #{tpu_custom_call.1} parent=1 // loop_exit
      _
    %601 = vsyncpa [#allocation3], 1
    %s602 = scalar_lea.sflag [#allocation3], 1
    %603 = vsyncpa %s602, 1
    %604 = vsyncpa [#allocation5], 1
    %s605 = scalar_lea.sflag [#allocation5], 1
    %606 = vsyncpa %s605, 1

</llo_original>
